<compile_context>
chip_gen: v5e
topology: v5e:2x2
jax: 0.10.0
libtpu: 0.0.40
codegen_flags: <defaults>
</compile_context>

<pallas_src>
import functools

import jax
import jax.numpy as jnp
from jax.experimental import pallas as pl
from jax.experimental.pallas import tpu as pltpu


def _round_up(v, m):
    return ((v + m - 1) // m) * m


def _linear_kernel(x_ref, wt_ref, b_ref, o_ref):
    # x_ref : (bm, K)       streamed VMEM tile of inputs
    # wt_ref: (K, OUT_P)    full transposed weight, resident across the grid
    # b_ref : (1, OUT_P)    bias row, resident
    # o_ref : (bm, OUT_P)   output tile (lane-dense: OUT_P multiple of 128)
    acc = jnp.dot(x_ref[...], wt_ref[...], preferred_element_type=jnp.float32)
    o_ref[...] = (acc + b_ref[...]).astype(o_ref.dtype)


@functools.partial(jax.jit, static_argnames=("block_m", "use_bf16_inputs"))
def linear_classifier_forward(x, weight, bias, *, block_m=512, use_bf16_inputs=False):
    """x: (N, K) f32; weight: (OUT, K) f32 (PyTorch layout); bias: (OUT,) f32."""
    n, k = x.shape
    out = weight.shape[0]

    # Lane-dense output width (pad OUT up to a multiple of 128).
    out_p = max(128, _round_up(out, 128))

    # Clamp the M tile to the (8-aligned) batch so small batches don't get
    # oversized tiles; real batches use the full block_m (multiple of 256).
    bm = _round_up(min(block_m, _round_up(n, 8)), 8)

    in_dtype = jnp.bfloat16 if use_bf16_inputs else x.dtype
    x_in = x.astype(in_dtype)
    wt = jnp.pad(weight.T, ((0, 0), (0, out_p - out))).astype(in_dtype)  # (K, OUT_P)
    b2 = jnp.pad(bias, (0, out_p - out)).reshape(1, out_p).astype(jnp.float32)

    grid = (pl.cdiv(n, bm),)

    # VMEM budget: double-buffered x tile + resident W^T + bias + output tile.
    itemsize = jnp.dtype(in_dtype).itemsize
    vmem_need = 2 * (bm * k * itemsize + k * out_p * itemsize
                     + out_p * 4 + bm * out_p * 4)
    vmem_limit = int(max(vmem_need + (4 << 20), 32 << 20))

    y_p = pl.pallas_call(
        _linear_kernel,
        out_shape=jax.ShapeDtypeStruct((n, out_p), jnp.float32),
        grid_spec=pltpu.PrefetchScalarGridSpec(
            num_scalar_prefetch=0,
            grid=grid,
            in_specs=[
                pl.BlockSpec((bm, k), lambda i: (i, 0)),      # x tile (streamed)
                pl.BlockSpec((k, out_p), lambda i: (0, 0)),   # full W^T (resident)
                pl.BlockSpec((1, out_p), lambda i: (0, 0)),   # bias (resident)
            ],
            out_specs=pl.BlockSpec((bm, out_p), lambda i: (i, 0)),
        ),
        compiler_params=pltpu.CompilerParams(
            dimension_semantics=("parallel",),
            vmem_limit_bytes=vmem_limit,
        ),
    )(x_in, wt, b2)

    return y_p[:, :out]


def init_linear_params(key, input_size, output_size=10):
    """Deterministic init mirroring nn.Linear's default uniform(-1/sqrt(in), 1/sqrt(in))."""
    k_w, k_b = jax.random.split(key)
    bound = 1.0 / jnp.sqrt(jnp.float32(input_size))
    weight = jax.random.uniform(
        k_w, (output_size, input_size), jnp.float32, -bound, bound
    )
    bias = jax.random.uniform(k_b, (output_size,), jnp.float32, -bound, bound)
    return weight, bias


if __name__ == "__main__":
    key = jax.random.PRNGKey(0)
    k_x, k_p, k_x2 = jax.random.split(key, 3)

    # CIFAR-10-like setup: flattened 3x32x32 image = 3072 features, 10 classes.
    input_size, output_size = 3 * 32 * 32, 10
    weight, bias = init_linear_params(k_p, input_size, output_size)

    # Case 1: tiny batch (tile auto-clamped to the batch).
    x_small = jax.random.normal(k_x, (8, input_size), jnp.float32)
    y_small = linear_classifier_forward(x_small, weight, bias)
    jax.block_until_ready(y_small)
    ref_small = x_small @ weight.T + bias
    assert y_small.shape == (8, output_size)
    assert jnp.allclose(y_small, ref_small, atol=1e-3, rtol=1e-3)

    # Case 2: multi-step parallel grid with a ragged last tile
    # (exercises the partial-tile masking path and >=2 grid steps).
    x_big = jax.random.normal(k_x2, (300, input_size), jnp.float32)
    y_big = linear_classifier_forward(x_big, weight, bias, block_m=128)
    jax.block_until_ready(y_big)
    ref_big = x_big @ weight.T + bias
    assert y_big.shape == (300, output_size)
    assert jnp.allclose(y_big, ref_big, atol=1e-3, rtol=1e-3)

    print("KERNEL_OK")
</pallas_src>

<mosaic_0001>
module attributes {stable_mosaic.version = 11 : i64} {
  func.func @_linear_kernel(%arg0: i32, %arg1: memref<8x3072xf32, #tpu.memory_space<vmem>>, %arg2: memref<3072x128xf32, #tpu.memory_space<vmem>>, %arg3: memref<1x128xf32, #tpu.memory_space<vmem>>, %arg4: memref<8x128xf32, #tpu.memory_space<vmem>>) attributes {dimension_semantics = [#tpu.dimension_semantics<parallel>], iteration_bounds = array<i64: 1>, scalar_prefetch = 0 : i64, scratch_operands = 0 : i64, tpu.core_type = #tpu.core_type<tc>, window_params = [{transform_indices = @transform_0, window_bounds = array<i64: 8, 3072>}, {pipeline_mode = #tpu.pipeline_mode<synchronous>, transform_indices = @transform_1, window_bounds = array<i64: 3072, 128>}, {pipeline_mode = #tpu.pipeline_mode<synchronous>, transform_indices = @transform_2, window_bounds = array<i64: 1, 128>}, {transform_indices = @transform_3, window_bounds = array<i64: 8, 128>}]} {
    %c0 = arith.constant 0 : index
    %c0_0 = arith.constant 0 : index
    %0 = vector.load %arg1[%c0, %c0_0] : memref<8x3072xf32, #tpu.memory_space<vmem>>, vector<8x3072xf32>
    %c0_1 = arith.constant 0 : index
    %c0_2 = arith.constant 0 : index
    %1 = vector.load %arg2[%c0_1, %c0_2] : memref<3072x128xf32, #tpu.memory_space<vmem>>, vector<3072x128xf32>
    %cst = arith.constant dense<0.000000e+00> : vector<8x128xf32>
    %2 = tpu.matmul %0, %1, %cst {dimension_numbers = #tpu.dot_dimension_numbers<[1], [0], [0], [1], [0, 0, 1, 1], [], []>} : vector<8x3072xf32>, vector<3072x128xf32>, vector<8x128xf32> -> vector<8x128xf32>
    %c0_3 = arith.constant 0 : index
    %c0_4 = arith.constant 0 : index
    %3 = vector.load %arg3[%c0_3, %c0_4] : memref<1x128xf32, #tpu.memory_space<vmem>>, vector<1x128xf32>
    %4 = vector.broadcast %3 : vector<1x128xf32> to vector<8x128xf32>
    %5 = arith.addf %2, %4 : vector<8x128xf32>
    %c0_5 = arith.constant 0 : index
    %c0_6 = arith.constant 0 : index
    %6 = vector.load %arg4[%c0_5, %c0_6] : memref<8x128xf32, #tpu.memory_space<vmem>>, vector<8x128xf32>
    tpu.vector_store %arg4[%c0_5, %c0_6], %5 {strides = array<i32>} : memref<8x128xf32, #tpu.memory_space<vmem>>, vector<8x128xf32>,
    return
  }
  func.func @transform_0(%arg0: i32) -> (i32, i32) {
    %c0_i32 = arith.constant 0 : i32
    %c0_i32_0 = arith.constant 0 : i32
    return %arg0, %c0_i32 : i32, i32
  }
  func.func @transform_1(%arg0: i32) -> (i32, i32) {
    %c0_i32 = arith.constant 0 : i32
    %c0_i32_0 = arith.constant 0 : i32
    %c0_i32_1 = arith.constant 0 : i32
    return %c0_i32, %c0_i32_0 : i32, i32
  }
  func.func @transform_2(%arg0: i32) -> (i32, i32) {
    %c0_i32 = arith.constant 0 : i32
    %c0_i32_0 = arith.constant 0 : i32
    %c0_i32_1 = arith.constant 0 : i32
    return %c0_i32, %c0_i32_0 : i32, i32
  }
  func.func @transform_3(%arg0: i32) -> (i32, i32) {
    %c0_i32 = arith.constant 0 : i32
    %c0_i32_0 = arith.constant 0 : i32
    return %arg0, %c0_i32 : i32, i32
  }
}

</mosaic_0001>

<llo_original>
// kernel: linear_classifier_forward.1
$region0: #{linear_classifier_forward.1}
  #allocation0 [shape = 'u32[]', space=smem, size = 0x4, offset = 0x4, fixed_abs, tag = 'smem constant byte address 0x4 - core index']
  #allocation1 [shape = 'u32[72,128]{1,0:T(1,128)}', space=vmem, size = 0x9000, scoped, tag = 'internal scratch']
  %s0 = inlined_call_operand.vmem [shape: f32[8,3072], index: 0, kind: input, shape index: {}]
  %s1 = inlined_call_operand.vmem [shape: f32[3072,128], index: 1, kind: input, shape index: {}]
  %s2 = inlined_call_operand.vmem [shape: f32[1,128], index: 2, kind: input, shape index: {}]
  %s3 = inlined_call_operand.hbm [shape: f32[8,128], index: 3, kind: output, shape index: {}]
  %s4 = sld [smem:[#allocation0]]
  $region22: #{linear_classifier_forward.1} parent=0
    _
  %s6 = ssub.s32 1, %s4
  %s7 = scalar_select 0, %s6, %s4
  $region1: #{linear_classifier_forward.1} parent=0
    #allocation2 [shape = 'u8[4096]{0}', space=vmem, size = 0x1000, scoped, tag = 'output window, operand 0, single buffered']
    #allocation3 [shape = 's32[1]{0}', space=sflag, size = 0x4, scoped, tag = 'scoped memory for linear_classifier_forward.1']
    %8 = vsyncpa [#allocation3], 0
    // Predicated region
    $region2: #{linear_classifier_forward.1} parent=1 // pred_check
      _
    $region3: #{linear_classifier_forward.1} parent=1 // pred_check_branch
      %10 = sbr.rel (0) target = $region5
    $region4: #{linear_classifier_forward.1} parent=1 // pred_region
      _
    $region5: #{linear_classifier_forward.1} parent=1 // pred_fallthru
      _
    // Predicated region
    $region6: #{linear_classifier_forward.1} parent=1 // pred_check
      _
    $region7: #{linear_classifier_forward.1} parent=1 // pred_check_branch
      %12 = sbr.rel (0) target = $region9
    $region8: #{linear_classifier_forward.1} parent=1 // pred_region
      _
    $region9: #{linear_classifier_forward.1} parent=1 // pred_fallthru
      _
    // Predicated region
    $region10: #{linear_classifier_forward.1} parent=1 // pred_check
      _
    $region11: #{linear_classifier_forward.1} parent=1 // pred_check_branch
      %14 = sbr.rel (0) target = $region13
    $region12: #{linear_classifier_forward.1} parent=1 // pred_region
      _
    $region13: #{linear_classifier_forward.1} parent=1 // pred_fallthru
      _
    %v15 = vld [vmem:[%s0] sm:$0xff]
    %v16 = vld [vmem:[%s0 + $0x8] sm:$0xff]
    %v17 = vld [vmem:[%s0 + $0x10] sm:$0xff]
    %v18 = vld [vmem:[%s0 + $0x18] sm:$0xff]
    %v19 = vld [vmem:[%s0 + $0x20] sm:$0xff]
    %v20 = vld [vmem:[%s0 + $0x28] sm:$0xff]
    %v21 = vld [vmem:[%s0 + $0x30] sm:$0xff]
    %v22 = vld [vmem:[%s0 + $0x38] sm:$0xff]
    %v23 = vld [vmem:[%s0 + $0x40] sm:$0xff]
    %v24 = vld [vmem:[%s0 + $0x48] sm:$0xff]
    %v25 = vld [vmem:[%s0 + $0x50] sm:$0xff]
    %v26 = vld [vmem:[%s0 + $0x58] sm:$0xff]
    %v27 = vld [vmem:[%s0 + $0x60] sm:$0xff]
    %v28 = vld [vmem:[%s0 + $0x68] sm:$0xff]
    %v29 = vld [vmem:[%s0 + $0x70] sm:$0xff]
    %v30 = vld [vmem:[%s0 + $0x78] sm:$0xff]
    %v31 = vld [vmem:[%s0 + $0x80] sm:$0xff]
    %v32 = vld [vmem:[%s0 + $0x88] sm:$0xff]
    %v33 = vld [vmem:[%s0 + $0x90] sm:$0xff]
    %v34 = vld [vmem:[%s0 + $0x98] sm:$0xff]
    %v35 = vld [vmem:[%s0 + $0xa0] sm:$0xff]
    %v36 = vld [vmem:[%s0 + $0xa8] sm:$0xff]
    %v37 = vld [vmem:[%s0 + $0xb0] sm:$0xff]
    %v38 = vld [vmem:[%s0 + $0xb8] sm:$0xff]
    %v39 = vld [vmem:[%s1] sm:$0xff]
    %v40 = vld [vmem:[%s1 + $0x8] sm:$0xff]
    %v41 = vld [vmem:[%s1 + $0x10] sm:$0xff]
    %v42 = vld [vmem:[%s1 + $0x18] sm:$0xff]
    %v43 = vld [vmem:[%s1 + $0x20] sm:$0xff]
    %v44 = vld [vmem:[%s1 + $0x28] sm:$0xff]
    %v45 = vld [vmem:[%s1 + $0x30] sm:$0xff]
    %v46 = vld [vmem:[%s1 + $0x38] sm:$0xff]
    %v47 = vld [vmem:[%s1 + $0x40] sm:$0xff]
    %v48 = vld [vmem:[%s1 + $0x48] sm:$0xff]
    %v49 = vld [vmem:[%s1 + $0x50] sm:$0xff]
    %v50 = vld [vmem:[%s1 + $0x58] sm:$0xff]
    %v51 = vld [vmem:[%s1 + $0x60] sm:$0xff]
    %v52 = vld [vmem:[%s1 + $0x68] sm:$0xff]
    %v53 = vld [vmem:[%s1 + $0x70] sm:$0xff]
    %v54 = vld [vmem:[%s1 + $0x78] sm:$0xff]
    %v55 = vld [vmem:[%s1 + $0x80] sm:$0xff]
    %v56 = vld [vmem:[%s1 + $0x88] sm:$0xff]
    %v57 = vld [vmem:[%s1 + $0x90] sm:$0xff]
    %v58 = vld [vmem:[%s1 + $0x98] sm:$0xff]
    %v59 = vld [vmem:[%s1 + $0xa0] sm:$0xff]
    %v60 = vld [vmem:[%s1 + $0xa8] sm:$0xff]
    %v61 = vld [vmem:[%s1 + $0xb0] sm:$0xff]
    %v62 = vld [vmem:[%s1 + $0xb8] sm:$0xff]
    %v63 = vld [vmem:[%s1 + $0xc0] sm:$0xff]
    %v64 = vld [vmem:[%s1 + $0xc8] sm:$0xff]
    %v65 = vld [vmem:[%s1 + $0xd0] sm:$0xff]
    %v66 = vld [vmem:[%s1 + $0xd8] sm:$0xff]
    %v67 = vld [vmem:[%s1 + $0xe0] sm:$0xff]
    %v68 = vld [vmem:[%s1 + $0xe8] sm:$0xff]
    %v69 = vld [vmem:[%s1 + $0xf0] sm:$0xff]
    %v70 = vld [vmem:[%s1 + $0xf8] sm:$0xff]
    %v71 = vld [vmem:[%s1 + $0x100] sm:$0xff]
    %v72 = vld [vmem:[%s1 + $0x108] sm:$0xff]
    %v73 = vld [vmem:[%s1 + $0x110] sm:$0xff]
    %v74 = vld [vmem:[%s1 + $0x118] sm:$0xff]
    %v75 = vld [vmem:[%s1 + $0x120] sm:$0xff]
    %v76 = vld [vmem:[%s1 + $0x128] sm:$0xff]
    %v77 = vld [vmem:[%s1 + $0x130] sm:$0xff]
    %v78 = vld [vmem:[%s1 + $0x138] sm:$0xff]
    %v79 = vld [vmem:[%s1 + $0x140] sm:$0xff]
    %v80 = vld [vmem:[%s1 + $0x148] sm:$0xff]
    %v81 = vld [vmem:[%s1 + $0x150] sm:$0xff]
    %v82 = vld [vmem:[%s1 + $0x158] sm:$0xff]
    %v83 = vld [vmem:[%s1 + $0x160] sm:$0xff]
    %v84 = vld [vmem:[%s1 + $0x168] sm:$0xff]
    %v85 = vld [vmem:[%s1 + $0x170] sm:$0xff]
    %v86 = vld [vmem:[%s1 + $0x178] sm:$0xff]
    %v87 = vld [vmem:[%s1 + $0x180] sm:$0xff]
    %v88 = vld [vmem:[%s1 + $0x188] sm:$0xff]
    %v89 = vld [vmem:[%s1 + $0x190] sm:$0xff]
    %v90 = vld [vmem:[%s1 + $0x198] sm:$0xff]
    %v91 = vld [vmem:[%s1 + $0x1a0] sm:$0xff]
    %v92 = vld [vmem:[%s1 + $0x1a8] sm:$0xff]
    %v93 = vld [vmem:[%s1 + $0x1b0] sm:$0xff]
    %v94 = vld [vmem:[%s1 + $0x1b8] sm:$0xff]
    %v95 = vld [vmem:[%s1 + $0x1c0] sm:$0xff]
    %v96 = vld [vmem:[%s1 + $0x1c8] sm:$0xff]
    %v97 = vld [vmem:[%s1 + $0x1d0] sm:$0xff]
    %v98 = vld [vmem:[%s1 + $0x1d8] sm:$0xff]
    %v99 = vld [vmem:[%s1 + $0x1e0] sm:$0xff]
    %v100 = vld [vmem:[%s1 + $0x1e8] sm:$0xff]
    %v101 = vld [vmem:[%s1 + $0x1f0] sm:$0xff]
    %v102 = vld [vmem:[%s1 + $0x1f8] sm:$0xff]
    %v103 = vld [vmem:[%s1 + $0x200] sm:$0xff]
    %v104 = vld [vmem:[%s1 + $0x208] sm:$0xff]
    %v105 = vld [vmem:[%s1 + $0x210] sm:$0xff]
    %v106 = vld [vmem:[%s1 + $0x218] sm:$0xff]
    %v107 = vld [vmem:[%s1 + $0x220] sm:$0xff]
    %v108 = vld [vmem:[%s1 + $0x228] sm:$0xff]
    %v109 = vld [vmem:[%s1 + $0x230] sm:$0xff]
    %v110 = vld [vmem:[%s1 + $0x238] sm:$0xff]
    %v111 = vld [vmem:[%s1 + $0x240] sm:$0xff]
    %v112 = vld [vmem:[%s1 + $0x248] sm:$0xff]
    %v113 = vld [vmem:[%s1 + $0x250] sm:$0xff]
    %v114 = vld [vmem:[%s1 + $0x258] sm:$0xff]
    %v115 = vld [vmem:[%s1 + $0x260] sm:$0xff]
    %v116 = vld [vmem:[%s1 + $0x268] sm:$0xff]
    %v117 = vld [vmem:[%s1 + $0x270] sm:$0xff]
    %v118 = vld [vmem:[%s1 + $0x278] sm:$0xff]
    %v119 = vld [vmem:[%s1 + $0x280] sm:$0xff]
    %v120 = vld [vmem:[%s1 + $0x288] sm:$0xff]
    %v121 = vld [vmem:[%s1 + $0x290] sm:$0xff]
    %v122 = vld [vmem:[%s1 + $0x298] sm:$0xff]
    %v123 = vld [vmem:[%s1 + $0x2a0] sm:$0xff]
    %v124 = vld [vmem:[%s1 + $0x2a8] sm:$0xff]
    %v125 = vld [vmem:[%s1 + $0x2b0] sm:$0xff]
    %v126 = vld [vmem:[%s1 + $0x2b8] sm:$0xff]
    %v127 = vld [vmem:[%s1 + $0x2c0] sm:$0xff]
    %v128 = vld [vmem:[%s1 + $0x2c8] sm:$0xff]
    %v129 = vld [vmem:[%s1 + $0x2d0] sm:$0xff]
    %v130 = vld [vmem:[%s1 + $0x2d8] sm:$0xff]
    %v131 = vld [vmem:[%s1 + $0x2e0] sm:$0xff]
    %v132 = vld [vmem:[%s1 + $0x2e8] sm:$0xff]
    %v133 = vld [vmem:[%s1 + $0x2f0] sm:$0xff]
    %v134 = vld [vmem:[%s1 + $0x2f8] sm:$0xff]
    %v135 = vld [vmem:[%s1 + $0x300] sm:$0xff]
    %v136 = vld [vmem:[%s1 + $0x308] sm:$0xff]
    %v137 = vld [vmem:[%s1 + $0x310] sm:$0xff]
    %v138 = vld [vmem:[%s1 + $0x318] sm:$0xff]
    %v139 = vld [vmem:[%s1 + $0x320] sm:$0xff]
    %v140 = vld [vmem:[%s1 + $0x328] sm:$0xff]
    %v141 = vld [vmem:[%s1 + $0x330] sm:$0xff]
    %v142 = vld [vmem:[%s1 + $0x338] sm:$0xff]
    %v143 = vld [vmem:[%s1 + $0x340] sm:$0xff]
    %v144 = vld [vmem:[%s1 + $0x348] sm:$0xff]
    %v145 = vld [vmem:[%s1 + $0x350] sm:$0xff]
    %v146 = vld [vmem:[%s1 + $0x358] sm:$0xff]
    %v147 = vld [vmem:[%s1 + $0x360] sm:$0xff]
    %v148 = vld [vmem:[%s1 + $0x368] sm:$0xff]
    %v149 = vld [vmem:[%s1 + $0x370] sm:$0xff]
    %v150 = vld [vmem:[%s1 + $0x378] sm:$0xff]
    %v151 = vld [vmem:[%s1 + $0x380] sm:$0xff]
    %v152 = vld [vmem:[%s1 + $0x388] sm:$0xff]
    %v153 = vld [vmem:[%s1 + $0x390] sm:$0xff]
    %v154 = vld [vmem:[%s1 + $0x398] sm:$0xff]
    %v155 = vld [vmem:[%s1 + $0x3a0] sm:$0xff]
    %v156 = vld [vmem:[%s1 + $0x3a8] sm:$0xff]
    %v157 = vld [vmem:[%s1 + $0x3b0] sm:$0xff]
    %v158 = vld [vmem:[%s1 + $0x3b8] sm:$0xff]
    %v159 = vld [vmem:[%s1 + $0x3c0] sm:$0xff]
    %v160 = vld [vmem:[%s1 + $0x3c8] sm:$0xff]
    %v161 = vld [vmem:[%s1 + $0x3d0] sm:$0xff]
    %v162 = vld [vmem:[%s1 + $0x3d8] sm:$0xff]
    %v163 = vld [vmem:[%s1 + $0x3e0] sm:$0xff]
    %v164 = vld [vmem:[%s1 + $0x3e8] sm:$0xff]
    %v165 = vld [vmem:[%s1 + $0x3f0] sm:$0xff]
    %v166 = vld [vmem:[%s1 + $0x3f8] sm:$0xff]
    %v167 = vld [vmem:[%s1 + $0x400] sm:$0xff]
    %v168 = vld [vmem:[%s1 + $0x408] sm:$0xff]
    %v169 = vld [vmem:[%s1 + $0x410] sm:$0xff]
    %v170 = vld [vmem:[%s1 + $0x418] sm:$0xff]
    %v171 = vld [vmem:[%s1 + $0x420] sm:$0xff]
    %v172 = vld [vmem:[%s1 + $0x428] sm:$0xff]
    %v173 = vld [vmem:[%s1 + $0x430] sm:$0xff]
    %v174 = vld [vmem:[%s1 + $0x438] sm:$0xff]
    %v175 = vld [vmem:[%s1 + $0x440] sm:$0xff]
    %v176 = vld [vmem:[%s1 + $0x448] sm:$0xff]
    %v177 = vld [vmem:[%s1 + $0x450] sm:$0xff]
    %v178 = vld [vmem:[%s1 + $0x458] sm:$0xff]
    %v179 = vld [vmem:[%s1 + $0x460] sm:$0xff]
    %v180 = vld [vmem:[%s1 + $0x468] sm:$0xff]
    %v181 = vld [vmem:[%s1 + $0x470] sm:$0xff]
    %v182 = vld [vmem:[%s1 + $0x478] sm:$0xff]
    %v183 = vld [vmem:[%s1 + $0x480] sm:$0xff]
    %v184 = vld [vmem:[%s1 + $0x488] sm:$0xff]
    %v185 = vld [vmem:[%s1 + $0x490] sm:$0xff]
    %v186 = vld [vmem:[%s1 + $0x498] sm:$0xff]
    %v187 = vld [vmem:[%s1 + $0x4a0] sm:$0xff]
    %v188 = vld [vmem:[%s1 + $0x4a8] sm:$0xff]
    %v189 = vld [vmem:[%s1 + $0x4b0] sm:$0xff]
    %v190 = vld [vmem:[%s1 + $0x4b8] sm:$0xff]
    %v191 = vld [vmem:[%s1 + $0x4c0] sm:$0xff]
    %v192 = vld [vmem:[%s1 + $0x4c8] sm:$0xff]
    %v193 = vld [vmem:[%s1 + $0x4d0] sm:$0xff]
    %v194 = vld [vmem:[%s1 + $0x4d8] sm:$0xff]
    %v195 = vld [vmem:[%s1 + $0x4e0] sm:$0xff]
    %v196 = vld [vmem:[%s1 + $0x4e8] sm:$0xff]
    %v197 = vld [vmem:[%s1 + $0x4f0] sm:$0xff]
    %v198 = vld [vmem:[%s1 + $0x4f8] sm:$0xff]
    %v199 = vld [vmem:[%s1 + $0x500] sm:$0xff]
    %v200 = vld [vmem:[%s1 + $0x508] sm:$0xff]
    %v201 = vld [vmem:[%s1 + $0x510] sm:$0xff]
    %v202 = vld [vmem:[%s1 + $0x518] sm:$0xff]
    %v203 = vld [vmem:[%s1 + $0x520] sm:$0xff]
    %v204 = vld [vmem:[%s1 + $0x528] sm:$0xff]
    %v205 = vld [vmem:[%s1 + $0x530] sm:$0xff]
    %v206 = vld [vmem:[%s1 + $0x538] sm:$0xff]
    %v207 = vld [vmem:[%s1 + $0x540] sm:$0xff]
    %v208 = vld [vmem:[%s1 + $0x548] sm:$0xff]
    %v209 = vld [vmem:[%s1 + $0x550] sm:$0xff]
    %v210 = vld [vmem:[%s1 + $0x558] sm:$0xff]
    %v211 = vld [vmem:[%s1 + $0x560] sm:$0xff]
    %v212 = vld [vmem:[%s1 + $0x568] sm:$0xff]
    %v213 = vld [vmem:[%s1 + $0x570] sm:$0xff]
    %v214 = vld [vmem:[%s1 + $0x578] sm:$0xff]
    %v215 = vld [vmem:[%s1 + $0x580] sm:$0xff]
    %v216 = vld [vmem:[%s1 + $0x588] sm:$0xff]
    %v217 = vld [vmem:[%s1 + $0x590] sm:$0xff]
    %v218 = vld [vmem:[%s1 + $0x598] sm:$0xff]
    %v219 = vld [vmem:[%s1 + $0x5a0] sm:$0xff]
    %v220 = vld [vmem:[%s1 + $0x5a8] sm:$0xff]
    %v221 = vld [vmem:[%s1 + $0x5b0] sm:$0xff]
    %v222 = vld [vmem:[%s1 + $0x5b8] sm:$0xff]
    %v223 = vld [vmem:[%s1 + $0x5c0] sm:$0xff]
    %v224 = vld [vmem:[%s1 + $0x5c8] sm:$0xff]
    %v225 = vld [vmem:[%s1 + $0x5d0] sm:$0xff]
    %v226 = vld [vmem:[%s1 + $0x5d8] sm:$0xff]
    %v227 = vld [vmem:[%s1 + $0x5e0] sm:$0xff]
    %v228 = vld [vmem:[%s1 + $0x5e8] sm:$0xff]
    %v229 = vld [vmem:[%s1 + $0x5f0] sm:$0xff]
    %v230 = vld [vmem:[%s1 + $0x5f8] sm:$0xff]
    %v231 = vld [vmem:[%s1 + $0x600] sm:$0xff]
    %v232 = vld [vmem:[%s1 + $0x608] sm:$0xff]
    %v233 = vld [vmem:[%s1 + $0x610] sm:$0xff]
    %v234 = vld [vmem:[%s1 + $0x618] sm:$0xff]
    %v235 = vld [vmem:[%s1 + $0x620] sm:$0xff]
    %v236 = vld [vmem:[%s1 + $0x628] sm:$0xff]
    %v237 = vld [vmem:[%s1 + $0x630] sm:$0xff]
    %v238 = vld [vmem:[%s1 + $0x638] sm:$0xff]
    %v239 = vld [vmem:[%s1 + $0x640] sm:$0xff]
    %v240 = vld [vmem:[%s1 + $0x648] sm:$0xff]
    %v241 = vld [vmem:[%s1 + $0x650] sm:$0xff]
    %v242 = vld [vmem:[%s1 + $0x658] sm:$0xff]
    %v243 = vld [vmem:[%s1 + $0x660] sm:$0xff]
    %v244 = vld [vmem:[%s1 + $0x668] sm:$0xff]
    %v245 = vld [vmem:[%s1 + $0x670] sm:$0xff]
    %v246 = vld [vmem:[%s1 + $0x678] sm:$0xff]
    %v247 = vld [vmem:[%s1 + $0x680] sm:$0xff]
    %v248 = vld [vmem:[%s1 + $0x688] sm:$0xff]
    %v249 = vld [vmem:[%s1 + $0x690] sm:$0xff]
    %v250 = vld [vmem:[%s1 + $0x698] sm:$0xff]
    %v251 = vld [vmem:[%s1 + $0x6a0] sm:$0xff]
    %v252 = vld [vmem:[%s1 + $0x6a8] sm:$0xff]
    %v253 = vld [vmem:[%s1 + $0x6b0] sm:$0xff]
    %v254 = vld [vmem:[%s1 + $0x6b8] sm:$0xff]
    %v255 = vld [vmem:[%s1 + $0x6c0] sm:$0xff]
    %v256 = vld [vmem:[%s1 + $0x6c8] sm:$0xff]
    %v257 = vld [vmem:[%s1 + $0x6d0] sm:$0xff]
    %v258 = vld [vmem:[%s1 + $0x6d8] sm:$0xff]
    %v259 = vld [vmem:[%s1 + $0x6e0] sm:$0xff]
    %v260 = vld [vmem:[%s1 + $0x6e8] sm:$0xff]
    %v261 = vld [vmem:[%s1 + $0x6f0] sm:$0xff]
    %v262 = vld [vmem:[%s1 + $0x6f8] sm:$0xff]
    %v263 = vld [vmem:[%s1 + $0x700] sm:$0xff]
    %v264 = vld [vmem:[%s1 + $0x708] sm:$0xff]
    %v265 = vld [vmem:[%s1 + $0x710] sm:$0xff]
    %v266 = vld [vmem:[%s1 + $0x718] sm:$0xff]
    %v267 = vld [vmem:[%s1 + $0x720] sm:$0xff]
    %v268 = vld [vmem:[%s1 + $0x728] sm:$0xff]
    %v269 = vld [vmem:[%s1 + $0x730] sm:$0xff]
    %v270 = vld [vmem:[%s1 + $0x738] sm:$0xff]
    %v271 = vld [vmem:[%s1 + $0x740] sm:$0xff]
    %v272 = vld [vmem:[%s1 + $0x748] sm:$0xff]
    %v273 = vld [vmem:[%s1 + $0x750] sm:$0xff]
    %v274 = vld [vmem:[%s1 + $0x758] sm:$0xff]
    %v275 = vld [vmem:[%s1 + $0x760] sm:$0xff]
    %v276 = vld [vmem:[%s1 + $0x768] sm:$0xff]
    %v277 = vld [vmem:[%s1 + $0x770] sm:$0xff]
    %v278 = vld [vmem:[%s1 + $0x778] sm:$0xff]
    %v279 = vld [vmem:[%s1 + $0x780] sm:$0xff]
    %v280 = vld [vmem:[%s1 + $0x788] sm:$0xff]
    %v281 = vld [vmem:[%s1 + $0x790] sm:$0xff]
    %v282 = vld [vmem:[%s1 + $0x798] sm:$0xff]
    %v283 = vld [vmem:[%s1 + $0x7a0] sm:$0xff]
    %v284 = vld [vmem:[%s1 + $0x7a8] sm:$0xff]
    %v285 = vld [vmem:[%s1 + $0x7b0] sm:$0xff]
    %v286 = vld [vmem:[%s1 + $0x7b8] sm:$0xff]
    %v287 = vld [vmem:[%s1 + $0x7c0] sm:$0xff]
    %v288 = vld [vmem:[%s1 + $0x7c8] sm:$0xff]
    %v289 = vld [vmem:[%s1 + $0x7d0] sm:$0xff]
    %v290 = vld [vmem:[%s1 + $0x7d8] sm:$0xff]
    %v291 = vld [vmem:[%s1 + $0x7e0] sm:$0xff]
    %v292 = vld [vmem:[%s1 + $0x7e8] sm:$0xff]
    %v293 = vld [vmem:[%s1 + $0x7f0] sm:$0xff]
    %v294 = vld [vmem:[%s1 + $0x7f8] sm:$0xff]
    %v295 = vld [vmem:[%s1 + $0x800] sm:$0xff]
    %v296 = vld [vmem:[%s1 + $0x808] sm:$0xff]
    %v297 = vld [vmem:[%s1 + $0x810] sm:$0xff]
    %v298 = vld [vmem:[%s1 + $0x818] sm:$0xff]
    %v299 = vld [vmem:[%s1 + $0x820] sm:$0xff]
    %v300 = vld [vmem:[%s1 + $0x828] sm:$0xff]
    %v301 = vld [vmem:[%s1 + $0x830] sm:$0xff]
    %v302 = vld [vmem:[%s1 + $0x838] sm:$0xff]
    %v303 = vld [vmem:[%s1 + $0x840] sm:$0xff]
    %v304 = vld [vmem:[%s1 + $0x848] sm:$0xff]
    %v305 = vld [vmem:[%s1 + $0x850] sm:$0xff]
    %v306 = vld [vmem:[%s1 + $0x858] sm:$0xff]
    %v307 = vld [vmem:[%s1 + $0x860] sm:$0xff]
    %v308 = vld [vmem:[%s1 + $0x868] sm:$0xff]
    %v309 = vld [vmem:[%s1 + $0x870] sm:$0xff]
    %v310 = vld [vmem:[%s1 + $0x878] sm:$0xff]
    %v311 = vld [vmem:[%s1 + $0x880] sm:$0xff]
    %v312 = vld [vmem:[%s1 + $0x888] sm:$0xff]
    %v313 = vld [vmem:[%s1 + $0x890] sm:$0xff]
    %v314 = vld [vmem:[%s1 + $0x898] sm:$0xff]
    %v315 = vld [vmem:[%s1 + $0x8a0] sm:$0xff]
    %v316 = vld [vmem:[%s1 + $0x8a8] sm:$0xff]
    %v317 = vld [vmem:[%s1 + $0x8b0] sm:$0xff]
    %v318 = vld [vmem:[%s1 + $0x8b8] sm:$0xff]
    %v319 = vld [vmem:[%s1 + $0x8c0] sm:$0xff]
    %v320 = vld [vmem:[%s1 + $0x8c8] sm:$0xff]
    %v321 = vld [vmem:[%s1 + $0x8d0] sm:$0xff]
    %v322 = vld [vmem:[%s1 + $0x8d8] sm:$0xff]
    %v323 = vld [vmem:[%s1 + $0x8e0] sm:$0xff]
    %v324 = vld [vmem:[%s1 + $0x8e8] sm:$0xff]
    %v325 = vld [vmem:[%s1 + $0x8f0] sm:$0xff]
    %v326 = vld [vmem:[%s1 + $0x8f8] sm:$0xff]
    %v327 = vld [vmem:[%s1 + $0x900] sm:$0xff]
    %v328 = vld [vmem:[%s1 + $0x908] sm:$0xff]
    %v329 = vld [vmem:[%s1 + $0x910] sm:$0xff]
    %v330 = vld [vmem:[%s1 + $0x918] sm:$0xff]
    %v331 = vld [vmem:[%s1 + $0x920] sm:$0xff]
    %v332 = vld [vmem:[%s1 + $0x928] sm:$0xff]
    %v333 = vld [vmem:[%s1 + $0x930] sm:$0xff]
    %v334 = vld [vmem:[%s1 + $0x938] sm:$0xff]
    %v335 = vld [vmem:[%s1 + $0x940] sm:$0xff]
    %v336 = vld [vmem:[%s1 + $0x948] sm:$0xff]
    %v337 = vld [vmem:[%s1 + $0x950] sm:$0xff]
    %v338 = vld [vmem:[%s1 + $0x958] sm:$0xff]
    %v339 = vld [vmem:[%s1 + $0x960] sm:$0xff]
    %v340 = vld [vmem:[%s1 + $0x968] sm:$0xff]
    %v341 = vld [vmem:[%s1 + $0x970] sm:$0xff]
    %v342 = vld [vmem:[%s1 + $0x978] sm:$0xff]
    %v343 = vld [vmem:[%s1 + $0x980] sm:$0xff]
    %v344 = vld [vmem:[%s1 + $0x988] sm:$0xff]
    %v345 = vld [vmem:[%s1 + $0x990] sm:$0xff]
    %v346 = vld [vmem:[%s1 + $0x998] sm:$0xff]
    %v347 = vld [vmem:[%s1 + $0x9a0] sm:$0xff]
    %v348 = vld [vmem:[%s1 + $0x9a8] sm:$0xff]
    %v349 = vld [vmem:[%s1 + $0x9b0] sm:$0xff]
    %v350 = vld [vmem:[%s1 + $0x9b8] sm:$0xff]
    %v351 = vld [vmem:[%s1 + $0x9c0] sm:$0xff]
    %v352 = vld [vmem:[%s1 + $0x9c8] sm:$0xff]
    %v353 = vld [vmem:[%s1 + $0x9d0] sm:$0xff]
    %v354 = vld [vmem:[%s1 + $0x9d8] sm:$0xff]
    %v355 = vld [vmem:[%s1 + $0x9e0] sm:$0xff]
    %v356 = vld [vmem:[%s1 + $0x9e8] sm:$0xff]
    %v357 = vld [vmem:[%s1 + $0x9f0] sm:$0xff]
    %v358 = vld [vmem:[%s1 + $0x9f8] sm:$0xff]
    %v359 = vld [vmem:[%s1 + $0xa00] sm:$0xff]
    %v360 = vld [vmem:[%s1 + $0xa08] sm:$0xff]
    %v361 = vld [vmem:[%s1 + $0xa10] sm:$0xff]
    %v362 = vld [vmem:[%s1 + $0xa18] sm:$0xff]
    %v363 = vld [vmem:[%s1 + $0xa20] sm:$0xff]
    %v364 = vld [vmem:[%s1 + $0xa28] sm:$0xff]
    %v365 = vld [vmem:[%s1 + $0xa30] sm:$0xff]
    %v366 = vld [vmem:[%s1 + $0xa38] sm:$0xff]
    %v367 = vld [vmem:[%s1 + $0xa40] sm:$0xff]
    %v368 = vld [vmem:[%s1 + $0xa48] sm:$0xff]
    %v369 = vld [vmem:[%s1 + $0xa50] sm:$0xff]
    %v370 = vld [vmem:[%s1 + $0xa58] sm:$0xff]
    %v371 = vld [vmem:[%s1 + $0xa60] sm:$0xff]
    %v372 = vld [vmem:[%s1 + $0xa68] sm:$0xff]
    %v373 = vld [vmem:[%s1 + $0xa70] sm:$0xff]
    %v374 = vld [vmem:[%s1 + $0xa78] sm:$0xff]
    %v375 = vld [vmem:[%s1 + $0xa80] sm:$0xff]
    %v376 = vld [vmem:[%s1 + $0xa88] sm:$0xff]
    %v377 = vld [vmem:[%s1 + $0xa90] sm:$0xff]
    %v378 = vld [vmem:[%s1 + $0xa98] sm:$0xff]
    %v379 = vld [vmem:[%s1 + $0xaa0] sm:$0xff]
    %v380 = vld [vmem:[%s1 + $0xaa8] sm:$0xff]
    %v381 = vld [vmem:[%s1 + $0xab0] sm:$0xff]
    %v382 = vld [vmem:[%s1 + $0xab8] sm:$0xff]
    %v383 = vld [vmem:[%s1 + $0xac0] sm:$0xff]
    %v384 = vld [vmem:[%s1 + $0xac8] sm:$0xff]
    %v385 = vld [vmem:[%s1 + $0xad0] sm:$0xff]
    %v386 = vld [vmem:[%s1 + $0xad8] sm:$0xff]
    %v387 = vld [vmem:[%s1 + $0xae0] sm:$0xff]
    %v388 = vld [vmem:[%s1 + $0xae8] sm:$0xff]
    %v389 = vld [vmem:[%s1 + $0xaf0] sm:$0xff]
    %v390 = vld [vmem:[%s1 + $0xaf8] sm:$0xff]
    %v391 = vld [vmem:[%s1 + $0xb00] sm:$0xff]
    %v392 = vld [vmem:[%s1 + $0xb08] sm:$0xff]
    %v393 = vld [vmem:[%s1 + $0xb10] sm:$0xff]
    %v394 = vld [vmem:[%s1 + $0xb18] sm:$0xff]
    %v395 = vld [vmem:[%s1 + $0xb20] sm:$0xff]
    %v396 = vld [vmem:[%s1 + $0xb28] sm:$0xff]
    %v397 = vld [vmem:[%s1 + $0xb30] sm:$0xff]
    %v398 = vld [vmem:[%s1 + $0xb38] sm:$0xff]
    %v399 = vld [vmem:[%s1 + $0xb40] sm:$0xff]
    %v400 = vld [vmem:[%s1 + $0xb48] sm:$0xff]
    %v401 = vld [vmem:[%s1 + $0xb50] sm:$0xff]
    %v402 = vld [vmem:[%s1 + $0xb58] sm:$0xff]
    %v403 = vld [vmem:[%s1 + $0xb60] sm:$0xff]
    %v404 = vld [vmem:[%s1 + $0xb68] sm:$0xff]
    %v405 = vld [vmem:[%s1 + $0xb70] sm:$0xff]
    %v406 = vld [vmem:[%s1 + $0xb78] sm:$0xff]
    %v407 = vld [vmem:[%s1 + $0xb80] sm:$0xff]
    %v408 = vld [vmem:[%s1 + $0xb88] sm:$0xff]
    %v409 = vld [vmem:[%s1 + $0xb90] sm:$0xff]
    %v410 = vld [vmem:[%s1 + $0xb98] sm:$0xff]
    %v411 = vld [vmem:[%s1 + $0xba0] sm:$0xff]
    %v412 = vld [vmem:[%s1 + $0xba8] sm:$0xff]
    %v413 = vld [vmem:[%s1 + $0xbb0] sm:$0xff]
    %v414 = vld [vmem:[%s1 + $0xbb8] sm:$0xff]
    %v415 = vld [vmem:[%s1 + $0xbc0] sm:$0xff]
    %v416 = vld [vmem:[%s1 + $0xbc8] sm:$0xff]
    %v417 = vld [vmem:[%s1 + $0xbd0] sm:$0xff]
    %v418 = vld [vmem:[%s1 + $0xbd8] sm:$0xff]
    %v419 = vld [vmem:[%s1 + $0xbe0] sm:$0xff]
    %v420 = vld [vmem:[%s1 + $0xbe8] sm:$0xff]
    %v421 = vld [vmem:[%s1 + $0xbf0] sm:$0xff]
    %v422 = vld [vmem:[%s1 + $0xbf8] sm:$0xff]
    %v423 = vld [vmem:[%s2] sm:$0x1]
    %v425 = vperm.slane %v423, 0
    %427 = vmatpush.msra.mxu0 %v54
    %428 = vmatpush.msra.mxu0 %v53
    %429 = vmatpush.msra.mxu0 %v52
    %430 = vmatpush.msra.mxu0 %v51
    %431 = vmatpush.msra.mxu0 %v50
    %432 = vmatpush.msra.mxu0 %v49
    %433 = vmatpush.msra.mxu0 %v48
    %434 = vmatpush.msra.mxu0 %v47
    %435 = vmatpush.msra.mxu0 %v46
    %436 = vmatpush.msra.mxu0 %v45
    %437 = vmatpush.msra.mxu0 %v44
    %438 = vmatpush.msra.mxu0 %v43
    %439 = vmatpush.msra.mxu0 %v42
    %440 = vmatpush.msra.mxu0 %v41
    %441 = vmatpush.msra.mxu0 %v40
    %442 = vmatpush.msra.mxu0 %v39
    %443 = vmatmul.f32.gmra.mxu0 %v15
    %v444 = vpop.f32.mrf.mxu0
    %v445 = vadd.f32 %v425, %v444
    %446 = vdwg.mxu0
    %447 = vmatpush.msra.mxu0 %v70
    %448 = vmatpush.msra.mxu0 %v69
    %449 = vmatpush.msra.mxu0 %v68
    %450 = vmatpush.msra.mxu0 %v67
    %451 = vmatpush.msra.mxu0 %v66
    %452 = vmatpush.msra.mxu0 %v65
    %453 = vmatpush.msra.mxu0 %v64
    %454 = vmatpush.msra.mxu0 %v63
    %455 = vmatpush.msra.mxu0 %v62
    %456 = vmatpush.msra.mxu0 %v61
    %457 = vmatpush.msra.mxu0 %v60
    %458 = vmatpush.msra.mxu0 %v59
    %459 = vmatpush.msra.mxu0 %v58
    %460 = vmatpush.msra.mxu0 %v57
    %461 = vmatpush.msra.mxu0 %v56
    %462 = vmatpush.msra.mxu0 %v55
    %463 = vmatmul.f32.gmra.mxu0 %v16
    %v464 = vpop.f32.mrf.mxu0
    %v465 = vadd.f32 %v445, %v464
    %466 = vdwg.mxu0
    %467 = vmatpush.msra.mxu0 %v86
    %468 = vmatpush.msra.mxu0 %v85
    %469 = vmatpush.msra.mxu0 %v84
    %470 = vmatpush.msra.mxu0 %v83
    %471 = vmatpush.msra.mxu0 %v82
    %472 = vmatpush.msra.mxu0 %v81
    %473 = vmatpush.msra.mxu0 %v80
    %474 = vmatpush.msra.mxu0 %v79
    %475 = vmatpush.msra.mxu0 %v78
    %476 = vmatpush.msra.mxu0 %v77
    %477 = vmatpush.msra.mxu0 %v76
    %478 = vmatpush.msra.mxu0 %v75
    %479 = vmatpush.msra.mxu0 %v74
    %480 = vmatpush.msra.mxu0 %v73
    %481 = vmatpush.msra.mxu0 %v72
    %482 = vmatpush.msra.mxu0 %v71
    %483 = vmatmul.f32.gmra.mxu0 %v17
    %v484 = vpop.f32.mrf.mxu0
    %v485 = vadd.f32 %v465, %v484
    %486 = vdwg.mxu0
    %487 = vmatpush.msra.mxu0 %v102
    %488 = vmatpush.msra.mxu0 %v101
    %489 = vmatpush.msra.mxu0 %v100
    %490 = vmatpush.msra.mxu0 %v99
    %491 = vmatpush.msra.mxu0 %v98
    %492 = vmatpush.msra.mxu0 %v97
    %493 = vmatpush.msra.mxu0 %v96
    %494 = vmatpush.msra.mxu0 %v95
    %495 = vmatpush.msra.mxu0 %v94
    %496 = vmatpush.msra.mxu0 %v93
    %497 = vmatpush.msra.mxu0 %v92
    %498 = vmatpush.msra.mxu0 %v91
    %499 = vmatpush.msra.mxu0 %v90
    %500 = vmatpush.msra.mxu0 %v89
    %501 = vmatpush.msra.mxu0 %v88
    %502 = vmatpush.msra.mxu0 %v87
    %503 = vmatmul.f32.gmra.mxu0 %v18
    %v504 = vpop.f32.mrf.mxu0
    %v505 = vadd.f32 %v485, %v504
    %506 = vdwg.mxu0
    %507 = vmatpush.msra.mxu0 %v118
    %508 = vmatpush.msra.mxu0 %v117
    %509 = vmatpush.msra.mxu0 %v116
    %510 = vmatpush.msra.mxu0 %v115
    %511 = vmatpush.msra.mxu0 %v114
    %512 = vmatpush.msra.mxu0 %v113
    %513 = vmatpush.msra.mxu0 %v112
    %514 = vmatpush.msra.mxu0 %v111
    %515 = vmatpush.msra.mxu0 %v110
    %516 = vmatpush.msra.mxu0 %v109
    %517 = vmatpush.msra.mxu0 %v108
    %518 = vmatpush.msra.mxu0 %v107
    %519 = vmatpush.msra.mxu0 %v106
    %520 = vmatpush.msra.mxu0 %v105
    %521 = vmatpush.msra.mxu0 %v104
    %522 = vmatpush.msra.mxu0 %v103
    %523 = vmatmul.f32.gmra.mxu0 %v19
    %v524 = vpop.f32.mrf.mxu0
    %v525 = vadd.f32 %v505, %v524
    %526 = vdwg.mxu0
    %527 = vmatpush.msra.mxu0 %v134
    %528 = vmatpush.msra.mxu0 %v133
    %529 = vmatpush.msra.mxu0 %v132
    %530 = vmatpush.msra.mxu0 %v131
    %531 = vmatpush.msra.mxu0 %v130
    %532 = vmatpush.msra.mxu0 %v129
    %533 = vmatpush.msra.mxu0 %v128
    %534 = vmatpush.msra.mxu0 %v127
    %535 = vmatpush.msra.mxu0 %v126
    %536 = vmatpush.msra.mxu0 %v125
    %537 = vmatpush.msra.mxu0 %v124
    %538 = vmatpush.msra.mxu0 %v123
    %539 = vmatpush.msra.mxu0 %v122
    %540 = vmatpush.msra.mxu0 %v121
    %541 = vmatpush.msra.mxu0 %v120
    %542 = vmatpush.msra.mxu0 %v119
    %543 = vmatmul.f32.gmra.mxu0 %v20
    %v544 = vpop.f32.mrf.mxu0
    %v545 = vadd.f32 %v525, %v544
    %546 = vdwg.mxu0
    %547 = vmatpush.msra.mxu0 %v150
    %548 = vmatpush.msra.mxu0 %v149
    %549 = vmatpush.msra.mxu0 %v148
    %550 = vmatpush.msra.mxu0 %v147
    %551 = vmatpush.msra.mxu0 %v146
    %552 = vmatpush.msra.mxu0 %v145
    %553 = vmatpush.msra.mxu0 %v144
    %554 = vmatpush.msra.mxu0 %v143
    %555 = vmatpush.msra.mxu0 %v142
    %556 = vmatpush.msra.mxu0 %v141
    %557 = vmatpush.msra.mxu0 %v140
    %558 = vmatpush.msra.mxu0 %v139
    %559 = vmatpush.msra.mxu0 %v138
    %560 = vmatpush.msra.mxu0 %v137
    %561 = vmatpush.msra.mxu0 %v136
    %562 = vmatpush.msra.mxu0 %v135
    %563 = vmatmul.f32.gmra.mxu0 %v21
    %v564 = vpop.f32.mrf.mxu0
    %v565 = vadd.f32 %v545, %v564
    %566 = vdwg.mxu0
    %567 = vmatpush.msra.mxu0 %v166
    %568 = vmatpush.msra.mxu0 %v165
    %569 = vmatpush.msra.mxu0 %v164
    %570 = vmatpush.msra.mxu0 %v163
    %571 = vmatpush.msra.mxu0 %v162
    %572 = vmatpush.msra.mxu0 %v161
    %573 = vmatpush.msra.mxu0 %v160
    %574 = vmatpush.msra.mxu0 %v159
    %575 = vmatpush.msra.mxu0 %v158
    %576 = vmatpush.msra.mxu0 %v157
    %577 = vmatpush.msra.mxu0 %v156
    %578 = vmatpush.msra.mxu0 %v155
    %579 = vmatpush.msra.mxu0 %v154
    %580 = vmatpush.msra.mxu0 %v153
    %581 = vmatpush.msra.mxu0 %v152
    %582 = vmatpush.msra.mxu0 %v151
    %583 = vmatmul.f32.gmra.mxu0 %v22
    %v584 = vpop.f32.mrf.mxu0
    %v585 = vadd.f32 %v565, %v584
    %586 = vdwg.mxu0
    %587 = vmatpush.msra.mxu0 %v182
    %588 = vmatpush.msra.mxu0 %v181
    %589 = vmatpush.msra.mxu0 %v180
    %590 = vmatpush.msra.mxu0 %v179
    %591 = vmatpush.msra.mxu0 %v178
    %592 = vmatpush.msra.mxu0 %v177
    %593 = vmatpush.msra.mxu0 %v176
    %594 = vmatpush.msra.mxu0 %v175
    %595 = vmatpush.msra.mxu0 %v174
    %596 = vmatpush.msra.mxu0 %v173
    %597 = vmatpush.msra.mxu0 %v172
    %598 = vmatpush.msra.mxu0 %v171
    %599 = vmatpush.msra.mxu0 %v170
    %600 = vmatpush.msra.mxu0 %v169
    %601 = vmatpush.msra.mxu0 %v168
    %602 = vmatpush.msra.mxu0 %v167
    %603 = vmatmul.f32.gmra.mxu0 %v23
    %v604 = vpop.f32.mrf.mxu0
    %v605 = vadd.f32 %v585, %v604
    %606 = vdwg.mxu0
    %607 = vmatpush.msra.mxu0 %v198
    %608 = vmatpush.msra.mxu0 %v197
    %609 = vmatpush.msra.mxu0 %v196
    %610 = vmatpush.msra.mxu0 %v195
    %611 = vmatpush.msra.mxu0 %v194
    %612 = vmatpush.msra.mxu0 %v193
    %613 = vmatpush.msra.mxu0 %v192
    %614 = vmatpush.msra.mxu0 %v191
    %615 = vmatpush.msra.mxu0 %v190
    %616 = vmatpush.msra.mxu0 %v189
    %617 = vmatpush.msra.mxu0 %v188
    %618 = vmatpush.msra.mxu0 %v187
    %619 = vmatpush.msra.mxu0 %v186
    %620 = vmatpush.msra.mxu0 %v185
    %621 = vmatpush.msra.mxu0 %v184
    %622 = vmatpush.msra.mxu0 %v183
    %623 = vmatmul.f32.gmra.mxu0 %v24
    %v624 = vpop.f32.mrf.mxu0
    %v625 = vadd.f32 %v605, %v624
    %626 = vdwg.mxu0
    %627 = vmatpush.msra.mxu0 %v214
    %628 = vmatpush.msra.mxu0 %v213
    %629 = vmatpush.msra.mxu0 %v212
    %630 = vmatpush.msra.mxu0 %v211
    %631 = vmatpush.msra.mxu0 %v210
    %632 = vmatpush.msra.mxu0 %v209
    %633 = vmatpush.msra.mxu0 %v208
    %634 = vmatpush.msra.mxu0 %v207
    %635 = vmatpush.msra.mxu0 %v206
    %636 = vmatpush.msra.mxu0 %v205
    %637 = vmatpush.msra.mxu0 %v204
    %638 = vmatpush.msra.mxu0 %v203
    %639 = vmatpush.msra.mxu0 %v202
    %640 = vmatpush.msra.mxu0 %v201
    %641 = vmatpush.msra.mxu0 %v200
    %642 = vmatpush.msra.mxu0 %v199
    %643 = vmatmul.f32.gmra.mxu0 %v25
    %v644 = vpop.f32.mrf.mxu0
    %v645 = vadd.f32 %v625, %v644
    %646 = vdwg.mxu0
    %647 = vmatpush.msra.mxu0 %v230
    %648 = vmatpush.msra.mxu0 %v229
    %649 = vmatpush.msra.mxu0 %v228
    %650 = vmatpush.msra.mxu0 %v227
    %651 = vmatpush.msra.mxu0 %v226
    %652 = vmatpush.msra.mxu0 %v225
    %653 = vmatpush.msra.mxu0 %v224
    %654 = vmatpush.msra.mxu0 %v223
    %655 = vmatpush.msra.mxu0 %v222
    %656 = vmatpush.msra.mxu0 %v221
    %657 = vmatpush.msra.mxu0 %v220
    %658 = vmatpush.msra.mxu0 %v219
    %659 = vmatpush.msra.mxu0 %v218
    %660 = vmatpush.msra.mxu0 %v217
    %661 = vmatpush.msra.mxu0 %v216
    %662 = vmatpush.msra.mxu0 %v215
    %663 = vmatmul.f32.gmra.mxu0 %v26
    %v664 = vpop.f32.mrf.mxu0
    %v665 = vadd.f32 %v645, %v664
    %666 = vdwg.mxu0
    %667 = vmatpush.msra.mxu0 %v246
    %668 = vmatpush.msra.mxu0 %v245
    %669 = vmatpush.msra.mxu0 %v244
    %670 = vmatpush.msra.mxu0 %v243
    %671 = vmatpush.msra.mxu0 %v242
    %672 = vmatpush.msra.mxu0 %v241
    %673 = vmatpush.msra.mxu0 %v240
    %674 = vmatpush.msra.mxu0 %v239
    %675 = vmatpush.msra.mxu0 %v238
    %676 = vmatpush.msra.mxu0 %v237
    %677 = vmatpush.msra.mxu0 %v236
    %678 = vmatpush.msra.mxu0 %v235
    %679 = vmatpush.msra.mxu0 %v234
    %680 = vmatpush.msra.mxu0 %v233
    %681 = vmatpush.msra.mxu0 %v232
    %682 = vmatpush.msra.mxu0 %v231
    %683 = vmatmul.f32.gmra.mxu0 %v27
    %v684 = vpop.f32.mrf.mxu0
    %v685 = vadd.f32 %v665, %v684
    %686 = vdwg.mxu0
    %687 = vmatpush.msra.mxu0 %v262
    %688 = vmatpush.msra.mxu0 %v261
    %689 = vmatpush.msra.mxu0 %v260
    %690 = vmatpush.msra.mxu0 %v259
    %691 = vmatpush.msra.mxu0 %v258
    %692 = vmatpush.msra.mxu0 %v257
    %693 = vmatpush.msra.mxu0 %v256
    %694 = vmatpush.msra.mxu0 %v255
    %695 = vmatpush.msra.mxu0 %v254
    %696 = vmatpush.msra.mxu0 %v253
    %697 = vmatpush.msra.mxu0 %v252
    %698 = vmatpush.msra.mxu0 %v251
    %699 = vmatpush.msra.mxu0 %v250
    %700 = vmatpush.msra.mxu0 %v249
    %701 = vmatpush.msra.mxu0 %v248
    %702 = vmatpush.msra.mxu0 %v247
    %703 = vmatmul.f32.gmra.mxu0 %v28
    %v704 = vpop.f32.mrf.mxu0
    %v705 = vadd.f32 %v685, %v704
    %706 = vdwg.mxu0
    %707 = vmatpush.msra.mxu0 %v278
    %708 = vmatpush.msra.mxu0 %v277
    %709 = vmatpush.msra.mxu0 %v276
    %710 = vmatpush.msra.mxu0 %v275
    %711 = vmatpush.msra.mxu0 %v274
    %712 = vmatpush.msra.mxu0 %v273
    %713 = vmatpush.msra.mxu0 %v272
    %714 = vmatpush.msra.mxu0 %v271
    %715 = vmatpush.msra.mxu0 %v270
    %716 = vmatpush.msra.mxu0 %v269
    %717 = vmatpush.msra.mxu0 %v268
    %718 = vmatpush.msra.mxu0 %v267
    %719 = vmatpush.msra.mxu0 %v266
    %720 = vmatpush.msra.mxu0 %v265
    %721 = vmatpush.msra.mxu0 %v264
    %722 = vmatpush.msra.mxu0 %v263
    %723 = vmatmul.f32.gmra.mxu0 %v29
    %v724 = vpop.f32.mrf.mxu0
    %v725 = vadd.f32 %v705, %v724
    %726 = vdwg.mxu0
    %727 = vmatpush.msra.mxu0 %v294
    %728 = vmatpush.msra.mxu0 %v293
    %729 = vmatpush.msra.mxu0 %v292
    %730 = vmatpush.msra.mxu0 %v291
    %731 = vmatpush.msra.mxu0 %v290
    %732 = vmatpush.msra.mxu0 %v289
    %733 = vmatpush.msra.mxu0 %v288
    %734 = vmatpush.msra.mxu0 %v287
    %735 = vmatpush.msra.mxu0 %v286
    %736 = vmatpush.msra.mxu0 %v285
    %737 = vmatpush.msra.mxu0 %v284
    %738 = vmatpush.msra.mxu0 %v283
    %739 = vmatpush.msra.mxu0 %v282
    %740 = vmatpush.msra.mxu0 %v281
    %741 = vmatpush.msra.mxu0 %v280
    %742 = vmatpush.msra.mxu0 %v279
    %743 = vmatmul.f32.gmra.mxu0 %v30
    %v744 = vpop.f32.mrf.mxu0
    %v745 = vadd.f32 %v725, %v744
    %746 = vdwg.mxu0
    %747 = vmatpush.msra.mxu0 %v310
    %748 = vmatpush.msra.mxu0 %v309
    %749 = vmatpush.msra.mxu0 %v308
    %750 = vmatpush.msra.mxu0 %v307
    %751 = vmatpush.msra.mxu0 %v306
    %752 = vmatpush.msra.mxu0 %v305
    %753 = vmatpush.msra.mxu0 %v304
    %754 = vmatpush.msra.mxu0 %v303
    %755 = vmatpush.msra.mxu0 %v302
    %756 = vmatpush.msra.mxu0 %v301
    %757 = vmatpush.msra.mxu0 %v300
    %758 = vmatpush.msra.mxu0 %v299
    %759 = vmatpush.msra.mxu0 %v298
    %760 = vmatpush.msra.mxu0 %v297
    %761 = vmatpush.msra.mxu0 %v296
    %762 = vmatpush.msra.mxu0 %v295
    %763 = vmatmul.f32.gmra.mxu0 %v31
    %v764 = vpop.f32.mrf.mxu0
    %v765 = vadd.f32 %v745, %v764
    %766 = vdwg.mxu0
    %767 = vmatpush.msra.mxu0 %v326
    %768 = vmatpush.msra.mxu0 %v325
    %769 = vmatpush.msra.mxu0 %v324
    %770 = vmatpush.msra.mxu0 %v323
    %771 = vmatpush.msra.mxu0 %v322
    %772 = vmatpush.msra.mxu0 %v321
    %773 = vmatpush.msra.mxu0 %v320
    %774 = vmatpush.msra.mxu0 %v319
    %775 = vmatpush.msra.mxu0 %v318
    %776 = vmatpush.msra.mxu0 %v317
    %777 = vmatpush.msra.mxu0 %v316
    %778 = vmatpush.msra.mxu0 %v315
    %779 = vmatpush.msra.mxu0 %v314
    %780 = vmatpush.msra.mxu0 %v313
    %781 = vmatpush.msra.mxu0 %v312
    %782 = vmatpush.msra.mxu0 %v311
    %783 = vmatmul.f32.gmra.mxu0 %v32
    %v784 = vpop.f32.mrf.mxu0
    %v785 = vadd.f32 %v765, %v784
    %786 = vdwg.mxu0
    %787 = vmatpush.msra.mxu0 %v342
    %788 = vmatpush.msra.mxu0 %v341
    %789 = vmatpush.msra.mxu0 %v340
    %790 = vmatpush.msra.mxu0 %v339
    %791 = vmatpush.msra.mxu0 %v338
    %792 = vmatpush.msra.mxu0 %v337
    %793 = vmatpush.msra.mxu0 %v336
    %794 = vmatpush.msra.mxu0 %v335
    %795 = vmatpush.msra.mxu0 %v334
    %796 = vmatpush.msra.mxu0 %v333
    %797 = vmatpush.msra.mxu0 %v332
    %798 = vmatpush.msra.mxu0 %v331
    %799 = vmatpush.msra.mxu0 %v330
    %800 = vmatpush.msra.mxu0 %v329
    %801 = vmatpush.msra.mxu0 %v328
    %802 = vmatpush.msra.mxu0 %v327
    %803 = vmatmul.f32.gmra.mxu0 %v33
    %v804 = vpop.f32.mrf.mxu0
    %v805 = vadd.f32 %v785, %v804
    %806 = vdwg.mxu0
    %807 = vmatpush.msra.mxu0 %v358
    %808 = vmatpush.msra.mxu0 %v357
    %809 = vmatpush.msra.mxu0 %v356
    %810 = vmatpush.msra.mxu0 %v355
    %811 = vmatpush.msra.mxu0 %v354
    %812 = vmatpush.msra.mxu0 %v353
    %813 = vmatpush.msra.mxu0 %v352
    %814 = vmatpush.msra.mxu0 %v351
    %815 = vmatpush.msra.mxu0 %v350
    %816 = vmatpush.msra.mxu0 %v349
    %817 = vmatpush.msra.mxu0 %v348
    %818 = vmatpush.msra.mxu0 %v347
    %819 = vmatpush.msra.mxu0 %v346
    %820 = vmatpush.msra.mxu0 %v345
    %821 = vmatpush.msra.mxu0 %v344
    %822 = vmatpush.msra.mxu0 %v343
    %823 = vmatmul.f32.gmra.mxu0 %v34
    %v824 = vpop.f32.mrf.mxu0
    %v825 = vadd.f32 %v805, %v824
    %826 = vdwg.mxu0
    %827 = vmatpush.msra.mxu0 %v374
    %828 = vmatpush.msra.mxu0 %v373
    %829 = vmatpush.msra.mxu0 %v372
    %830 = vmatpush.msra.mxu0 %v371
    %831 = vmatpush.msra.mxu0 %v370
    %832 = vmatpush.msra.mxu0 %v369
    %833 = vmatpush.msra.mxu0 %v368
    %834 = vmatpush.msra.mxu0 %v367
    %835 = vmatpush.msra.mxu0 %v366
    %836 = vmatpush.msra.mxu0 %v365
    %837 = vmatpush.msra.mxu0 %v364
    %838 = vmatpush.msra.mxu0 %v363
    %839 = vmatpush.msra.mxu0 %v362
    %840 = vmatpush.msra.mxu0 %v361
    %841 = vmatpush.msra.mxu0 %v360
    %842 = vmatpush.msra.mxu0 %v359
    %843 = vmatmul.f32.gmra.mxu0 %v35
    %v844 = vpop.f32.mrf.mxu0
    %v845 = vadd.f32 %v825, %v844
    %846 = vdwg.mxu0
    %847 = vmatpush.msra.mxu0 %v390
    %848 = vmatpush.msra.mxu0 %v389
    %849 = vmatpush.msra.mxu0 %v388
    %850 = vmatpush.msra.mxu0 %v387
    %851 = vmatpush.msra.mxu0 %v386
    %852 = vmatpush.msra.mxu0 %v385
    %853 = vmatpush.msra.mxu0 %v384
    %854 = vmatpush.msra.mxu0 %v383
    %855 = vmatpush.msra.mxu0 %v382
    %856 = vmatpush.msra.mxu0 %v381
    %857 = vmatpush.msra.mxu0 %v380
    %858 = vmatpush.msra.mxu0 %v379
    %859 = vmatpush.msra.mxu0 %v378
    %860 = vmatpush.msra.mxu0 %v377
    %861 = vmatpush.msra.mxu0 %v376
    %862 = vmatpush.msra.mxu0 %v375
    %863 = vmatmul.f32.gmra.mxu0 %v36
    %v864 = vpop.f32.mrf.mxu0
    %v865 = vadd.f32 %v845, %v864
    %866 = vdwg.mxu0
    %867 = vmatpush.msra.mxu0 %v406
    %868 = vmatpush.msra.mxu0 %v405
    %869 = vmatpush.msra.mxu0 %v404
    %870 = vmatpush.msra.mxu0 %v403
    %871 = vmatpush.msra.mxu0 %v402
    %872 = vmatpush.msra.mxu0 %v401
    %873 = vmatpush.msra.mxu0 %v400
    %874 = vmatpush.msra.mxu0 %v399
    %875 = vmatpush.msra.mxu0 %v398
    %876 = vmatpush.msra.mxu0 %v397
    %877 = vmatpush.msra.mxu0 %v396
    %878 = vmatpush.msra.mxu0 %v395
    %879 = vmatpush.msra.mxu0 %v394
    %880 = vmatpush.msra.mxu0 %v393
    %881 = vmatpush.msra.mxu0 %v392
    %882 = vmatpush.msra.mxu0 %v391
    %883 = vmatmul.f32.gmra.mxu0 %v37
    %v884 = vpop.f32.mrf.mxu0
    %v885 = vadd.f32 %v865, %v884
    %886 = vdwg.mxu0
    %887 = vmatpush.msra.mxu0 %v422
    %888 = vmatpush.msra.mxu0 %v421
    %889 = vmatpush.msra.mxu0 %v420
    %890 = vmatpush.msra.mxu0 %v419
    %891 = vmatpush.msra.mxu0 %v418
    %892 = vmatpush.msra.mxu0 %v417
    %893 = vmatpush.msra.mxu0 %v416
    %894 = vmatpush.msra.mxu0 %v415
    %895 = vmatpush.msra.mxu0 %v414
    %896 = vmatpush.msra.mxu0 %v413
    %897 = vmatpush.msra.mxu0 %v412
    %898 = vmatpush.msra.mxu0 %v411
    %899 = vmatpush.msra.mxu0 %v410
    %900 = vmatpush.msra.mxu0 %v409
    %901 = vmatpush.msra.mxu0 %v408
    %902 = vmatpush.msra.mxu0 %v407
    %903 = vmatmul.f32.gmra.mxu0 %v38
    %v904 = vpop.f32.mrf.mxu0
    %v905 = vadd.f32 %v885, %v904
    %906 = vdwg.mxu0
    %907 = vst [vmem:[#allocation2] sm:$0xff] %v905
    // Predicated region
    $region14: #{linear_classifier_forward.1} parent=1 // pred_check
      _
    $region15: #{linear_classifier_forward.1} parent=1 // pred_check_branch
      %909 = sbr.rel (0) target = $region17
    $region16: #{linear_classifier_forward.1} parent=1 // pred_region
      %911 = vsyncadd [#allocation3], 0
      %s913 = sshll.u32 [#allocation2], 4
      %s914 = int_to_ptr.vmem [resolvable:$true] %s913
      %s915 = sshll.u32 %s3, 4
      %s916 = int_to_ptr.hbm [resolvable:$true] %s915
      %918 = dma.vmem_to_hbm [thread:$0]  %s914, 128, %s916, [#allocation3]
    $region17: #{linear_classifier_forward.1} parent=1 // pred_fallthru
      _
    // Predicated region
    $region18: #{linear_classifier_forward.1} parent=1 // pred_check
      _
    $region19: #{linear_classifier_forward.1} parent=1 // pred_check_branch
      %920 = sbr.rel (0) target = $region21
    $region20: #{linear_classifier_forward.1} parent=1 // pred_region
      %922 = dma.done [#allocation3], 128
    $region21: #{linear_classifier_forward.1} parent=1 // pred_fallthru
      _
    %923 = vsyncpa [#allocation3], 1

</llo_original>
